<compile_context>
chip_gen: v6e
topology: v6e:2x2x1
jax: 0.10.0
libtpu: 0.0.40
codegen_flags: <defaults>
</compile_context>

<pallas_src>
import jax
import jax.numpy as jnp
from jax.experimental import pallas as pl
from jax.experimental.pallas import tpu as pltpu

HIDDEN = 128
BN_EPS = 1e-5

# Packed small-operand buffer layout, rows of a (10, 128) f32 array:
#   rows 0-3 : W1 (4, 128)   Linear(4,128) weight, stored (in, out)
#   row  4   : gamma (BatchNorm1d weight)
#   row  5   : beta  (BatchNorm1d bias)
#   row  6   : b2 zero-padded to 128
#   row  7   : b3 zero-padded to 128
#   row  8   : w4 (Linear(32,1) weight) zero-padded to 128, f32
#   row  9   : b4 scalar in column 0
# (b1 is intentionally NOT packed: it cancels under train-mode BatchNorm.)
W1_ROW, GAMMA_ROW, BETA_ROW, B2_ROW, B3_ROW, W4_ROW, B4_ROW = 0, 4, 5, 6, 7, 8, 9
N_VEC_ROWS = 10


def mlp_kernel(x_ref, vec_ref, w_ref, o_ref):
    x = x_ref[...].astype(jnp.float32)                                  # (B, 4)

    # ---- Layer 1: Linear(4, 128) on the VPU (K=4 would waste the MXU). ----
    # b1 omitted: BatchNorm subtracts the batch mean right after, so it cancels.
    h = (x[:, 0:1] * vec_ref[W1_ROW + 0:W1_ROW + 1, :]
         + x[:, 1:2] * vec_ref[W1_ROW + 1:W1_ROW + 2, :]
         + x[:, 2:3] * vec_ref[W1_ROW + 2:W1_ROW + 3, :]
         + x[:, 3:4] * vec_ref[W1_ROW + 3:W1_ROW + 4, :])               # (B, 128)

    # ---- BatchNorm1d(128): train-mode batch stats, affine folded to one FMA ----
    mean = jnp.mean(h, axis=0, keepdims=True)                           # (1, 128)
    mean_sq = jnp.mean(h * h, axis=0, keepdims=True)
    var = jnp.maximum(mean_sq - mean * mean, 0.0)      # clamp one-pass cancellation
    s = vec_ref[GAMMA_ROW:GAMMA_ROW + 1, :] * jax.lax.rsqrt(var + BN_EPS)
    t = vec_ref[BETA_ROW:BETA_ROW + 1, :] - mean * s                    # (1, 128)
    h = jnp.maximum(h * s + t, 0.0)              # single (B,128) FMA + ReLU, f32

    # ---- Layers 2-3: bf16 MXU matmuls on zero-padded (128,128) weights ----
    h = jnp.dot(h.astype(jnp.bfloat16), w_ref[0],
                preferred_element_type=jnp.float32) + vec_ref[B2_ROW:B2_ROW + 1, :]
    h = jnp.maximum(h, 0.0)                                             # cols 64+ = 0
    h = jnp.dot(h.astype(jnp.bfloat16), w_ref[1],
                preferred_element_type=jnp.float32) + vec_ref[B3_ROW:B3_ROW + 1, :]
    h = jnp.maximum(h, 0.0)                                             # cols 32+ = 0

    # ---- Layer 4: Linear(32,1) as f32 VPU multiply + XLU lane reduction ----
    w4 = vec_ref[W4_ROW:W4_ROW + 1, :]                 # (1,128), cols 32+ are zero
    b4 = vec_ref[B4_ROW:B4_ROW + 1, :]                 # scalar bias in column 0
    y = jnp.sum(h * w4, axis=-1, keepdims=True) + b4[:, :1]             # (B, 1)
    o_ref[...] = y.astype(o_ref.dtype)


def model_forward(x, vecs, wstack):
    """x: (B, 4) f32, vecs: (10, 128) f32, wstack: (2, 128, 128) bf16 -> (B, 1) f32."""
    B = x.shape[0]
    vmem = pl.BlockSpec(memory_space=pltpu.MemorySpace.VMEM)
    return pl.pallas_call(
        mlp_kernel,
        out_shape=jax.ShapeDtypeStruct((B, 1), jnp.float32),
        in_specs=[vmem, vmem, vmem],
        out_specs=vmem,
    )(x, vecs, wstack)


def init_params(key):
    """Per-layer parameters with PyTorch-default uniform init (weights stored (in, out))."""
    dims = [(4, HIDDEN), (HIDDEN, HIDDEN // 2), (HIDDEN // 2, HIDDEN // 4),
            (HIDDEN // 4, 1)]
    keys = jax.random.split(key, 2 * len(dims))
    params = []
    for i, (fan_in, fan_out) in enumerate(dims):
        bound = 1.0 / jnp.sqrt(fan_in)
        w = jax.random.uniform(keys[2 * i], (fan_in, fan_out), jnp.float32,
                               -bound, bound)
        b = jax.random.uniform(keys[2 * i + 1], (fan_out,), jnp.float32,
                               -bound, bound)
        params.append((w, b))
        if i == 0:
            gamma = jnp.ones((HIDDEN,), jnp.float32)
            beta = jnp.zeros((HIDDEN,), jnp.float32)
    (w1, b1), (w2, b2), (w3, b3), (w4, b4) = params
    return (w1, b1, gamma, beta, w2, b2, w3, b3, w4, b4)


def pack_params(raw):
    """Pack the small tensors into (vecs, wstack): 2 weight DMAs, 64 KiB of bf16 MXU weights."""
    w1, b1, gamma, beta, w2, b2, w3, b3, w4, b4 = raw
    del b1  # cancels under training-mode BatchNorm; kernel never needs it
    vecs = jnp.zeros((N_VEC_ROWS, HIDDEN), jnp.float32)
    vecs = vecs.at[W1_ROW:W1_ROW + 4, :].set(w1)
    vecs = vecs.at[GAMMA_ROW, :].set(gamma)
    vecs = vecs.at[BETA_ROW, :].set(beta)
    vecs = vecs.at[B2_ROW, :b2.shape[0]].set(b2)
    vecs = vecs.at[B3_ROW, :b3.shape[0]].set(b3)
    vecs = vecs.at[W4_ROW, :w4.shape[0]].set(w4[:, 0])   # (32,1) -> padded f32 row
    vecs = vecs.at[B4_ROW, 0].set(b4[0])

    wstack = jnp.zeros((2, HIDDEN, HIDDEN), jnp.bfloat16)
    wstack = wstack.at[0, :w2.shape[0], :w2.shape[1]].set(w2.astype(jnp.bfloat16))
    wstack = wstack.at[1, :w3.shape[0], :w3.shape[1]].set(w3.astype(jnp.bfloat16))
    return vecs, wstack


def reference_forward(x, raw):
    """Pure-JAX f32 reference of the PyTorch forward (train-mode BatchNorm)."""
    w1, b1, gamma, beta, w2, b2, w3, b3, w4, b4 = raw
    h = x @ w1 + b1
    mean = jnp.mean(h, axis=0, keepdims=True)
    var = jnp.mean((h - mean) ** 2, axis=0, keepdims=True)
    h = (h - mean) * jax.lax.rsqrt(var + BN_EPS) * gamma + beta
    h = jnp.maximum(h, 0.0)
    h = jnp.maximum(h @ w2 + b2, 0.0)
    h = jnp.maximum(h @ w3 + b3, 0.0)
    return h @ w4 + b4


if __name__ == "__main__":
    key = jax.random.PRNGKey(0)
    k_x, k_p = jax.random.split(key)

    B = 8  # small batch; input features = 4 as implied by nn.Linear(4, 128)
    x = jax.random.normal(k_x, (B, 4), dtype=jnp.float32)
    raw = init_params(k_p)
    vecs, wstack = pack_params(raw)

    y = model_forward(x, vecs, wstack)
    y = jax.block_until_ready(y)
    assert y.shape == (B, 1) and y.dtype == jnp.float32

    y_ref = reference_forward(x, raw)
    assert bool(jnp.all(jnp.isfinite(y)))
    # Only layers 2-3 use bf16 MXU weights now (layer 4 is f32), so the
    # tolerance is tighter than the previous 1e-1 while staying robust.
    assert bool(jnp.allclose(y, y_ref, atol=5e-2, rtol=5e-2)), (y, y_ref)

    print("KERNEL_OK")
</pallas_src>

<mosaic_0001>
module attributes {stable_mosaic.version = 11 : i64} {
  func.func @mlp_kernel(%arg0: memref<8x4xf32, #tpu.memory_space<vmem>>, %arg1: memref<10x128xf32, #tpu.memory_space<vmem>>, %arg2: memref<2x128x128xbf16, #tpu.memory_space<vmem>>, %arg3: memref<8x1xf32, #tpu.memory_space<vmem>>) attributes {dimension_semantics = [], scalar_prefetch = 0 : i64, scratch_operands = 0 : i64, tpu.core_type = #tpu.core_type<tc>} {
    %c0 = arith.constant 0 : index
    %c0_0 = arith.constant 0 : index
    %0 = vector.load %arg0[%c0, %c0_0] : memref<8x4xf32, #tpu.memory_space<vmem>>, vector<8x4xf32>
    %1 = vector.extract_strided_slice %0 {offsets = [0, 0], sizes = [8, 1], strides = [1, 1]} : vector<8x4xf32> to vector<8x1xf32>
    %c0_1 = arith.constant 0 : index
    %c0_2 = arith.constant 0 : index
    %2 = vector.load %arg1[%c0_1, %c0_2] : memref<10x128xf32, #tpu.memory_space<vmem>>, vector<1x128xf32>
    %3 = vector.broadcast %1 : vector<8x1xf32> to vector<8x128xf32>
    %4 = vector.broadcast %2 : vector<1x128xf32> to vector<8x128xf32>
    %5 = arith.mulf %3, %4 : vector<8x128xf32>
    %6 = vector.extract_strided_slice %0 {offsets = [0, 1], sizes = [8, 1], strides = [1, 1]} : vector<8x4xf32> to vector<8x1xf32>
    %c1 = arith.constant 1 : index
    %c0_3 = arith.constant 0 : index
    %7 = vector.load %arg1[%c1, %c0_3] : memref<10x128xf32, #tpu.memory_space<vmem>>, vector<1x128xf32>
    %8 = vector.broadcast %6 : vector<8x1xf32> to vector<8x128xf32>
    %9 = vector.broadcast %7 : vector<1x128xf32> to vector<8x128xf32>
    %10 = arith.mulf %8, %9 : vector<8x128xf32>
    %11 = arith.addf %5, %10 : vector<8x128xf32>
    %12 = vector.extract_strided_slice %0 {offsets = [0, 2], sizes = [8, 1], strides = [1, 1]} : vector<8x4xf32> to vector<8x1xf32>
    %c2 = arith.constant 2 : index
    %c0_4 = arith.constant 0 : index
    %13 = vector.load %arg1[%c2, %c0_4] : memref<10x128xf32, #tpu.memory_space<vmem>>, vector<1x128xf32>
    %14 = vector.broadcast %12 : vector<8x1xf32> to vector<8x128xf32>
    %15 = vector.broadcast %13 : vector<1x128xf32> to vector<8x128xf32>
    %16 = arith.mulf %14, %15 : vector<8x128xf32>
    %17 = arith.addf %11, %16 : vector<8x128xf32>
    %18 = vector.extract_strided_slice %0 {offsets = [0, 3], sizes = [8, 1], strides = [1, 1]} : vector<8x4xf32> to vector<8x1xf32>
    %c3 = arith.constant 3 : index
    %c0_5 = arith.constant 0 : index
    %19 = vector.load %arg1[%c3, %c0_5] : memref<10x128xf32, #tpu.memory_space<vmem>>, vector<1x128xf32>
    %20 = vector.broadcast %18 : vector<8x1xf32> to vector<8x128xf32>
    %21 = vector.broadcast %19 : vector<1x128xf32> to vector<8x128xf32>
    %22 = arith.mulf %20, %21 : vector<8x128xf32>
    %23 = arith.addf %17, %22 : vector<8x128xf32>
    %cst = arith.constant dense<0.000000e+00> : vector<128xf32>
    %24 = vector.multi_reduction <add>, %23, %cst [0] : vector<8x128xf32> to vector<128xf32>
    %25 = vector.shape_cast %24 : vector<128xf32> to vector<1x128xf32>
    %cst_6 = arith.constant 8.000000e+00 : f32
    %26 = vector.broadcast %cst_6 : f32 to vector<1x128xf32>
    %27 = arith.divf %25, %26 : vector<1x128xf32>
    %28 = arith.mulf %23, %23 : vector<8x128xf32>
    %cst_7 = arith.constant dense<0.000000e+00> : vector<128xf32>
    %29 = vector.multi_reduction <add>, %28, %cst_7 [0] : vector<8x128xf32> to vector<128xf32>
    %30 = vector.shape_cast %29 : vector<128xf32> to vector<1x128xf32>
    %cst_8 = arith.constant 8.000000e+00 : f32
    %31 = vector.broadcast %cst_8 : f32 to vector<1x128xf32>
    %32 = arith.divf %30, %31 : vector<1x128xf32>
    %33 = arith.mulf %27, %27 : vector<1x128xf32>
    %34 = arith.subf %32, %33 : vector<1x128xf32>
    %cst_9 = arith.constant 0.000000e+00 : f32
    %35 = vector.broadcast %cst_9 : f32 to vector<1x128xf32>
    %36 = arith.maximumf %34, %35 : vector<1x128xf32>
    %c4 = arith.constant 4 : index
    %c0_10 = arith.constant 0 : index
    %37 = vector.load %arg1[%c4, %c0_10] : memref<10x128xf32, #tpu.memory_space<vmem>>, vector<1x128xf32>
    %cst_11 = arith.constant 9.99999974E-6 : f32
    %38 = vector.broadcast %cst_11 : f32 to vector<1x128xf32>
    %39 = arith.addf %36, %38 : vector<1x128xf32>
    %40 = math.rsqrt %39 : vector<1x128xf32>
    %41 = arith.mulf %37, %40 : vector<1x128xf32>
    %c5 = arith.constant 5 : index
    %c0_12 = arith.constant 0 : index
    %42 = vector.load %arg1[%c5, %c0_12] : memref<10x128xf32, #tpu.memory_space<vmem>>, vector<1x128xf32>
    %43 = arith.mulf %27, %41 : vector<1x128xf32>
    %44 = arith.subf %42, %43 : vector<1x128xf32>
    %45 = vector.broadcast %41 : vector<1x128xf32> to vector<8x128xf32>
    %46 = arith.mulf %23, %45 : vector<8x128xf32>
    %47 = vector.broadcast %44 : vector<1x128xf32> to vector<8x128xf32>
    %48 = arith.addf %46, %47 : vector<8x128xf32>
    %cst_13 = arith.constant 0.000000e+00 : f32
    %49 = vector.broadcast %cst_13 : f32 to vector<8x128xf32>
    %50 = arith.maximumf %48, %49 : vector<8x128xf32>
    %51 = arith.truncf %50 : vector<8x128xf32> to vector<8x128xbf16>
    %c0_14 = arith.constant 0 : index
    %c0_15 = arith.constant 0 : index
    %c0_16 = arith.constant 0 : index
    %52 = vector.load %arg2[%c0_14, %c0_15, %c0_16] : memref<2x128x128xbf16, #tpu.memory_space<vmem>>, vector<1x128x128xbf16>
    %53 = vector.shape_cast %52 : vector<1x128x128xbf16> to vector<128x128xbf16>
    %cst_17 = arith.constant dense<0.000000e+00> : vector<8x128xf32>
    %54 = tpu.matmul %51, %53, %cst_17 {dimension_numbers = #tpu.dot_dimension_numbers<[1], [0], [0], [1], [0, 0, 1, 1], [], []>} : vector<8x128xbf16>, vector<128x128xbf16>, vector<8x128xf32> -> vector<8x128xf32>
    %c6 = arith.constant 6 : index
    %c0_18 = arith.constant 0 : index
    %55 = vector.load %arg1[%c6, %c0_18] : memref<10x128xf32, #tpu.memory_space<vmem>>, vector<1x128xf32>
    %56 = vector.broadcast %55 : vector<1x128xf32> to vector<8x128xf32>
    %57 = arith.addf %54, %56 : vector<8x128xf32>
    %cst_19 = arith.constant 0.000000e+00 : f32
    %58 = vector.broadcast %cst_19 : f32 to vector<8x128xf32>
    %59 = arith.maximumf %57, %58 : vector<8x128xf32>
    %60 = arith.truncf %59 : vector<8x128xf32> to vector<8x128xbf16>
    %c1_20 = arith.constant 1 : index
    %c0_21 = arith.constant 0 : index
    %c0_22 = arith.constant 0 : index
    %61 = vector.load %arg2[%c1_20, %c0_21, %c0_22] : memref<2x128x128xbf16, #tpu.memory_space<vmem>>, vector<1x128x128xbf16>
    %62 = vector.shape_cast %61 : vector<1x128x128xbf16> to vector<128x128xbf16>
    %cst_23 = arith.constant dense<0.000000e+00> : vector<8x128xf32>
    %63 = tpu.matmul %60, %62, %cst_23 {dimension_numbers = #tpu.dot_dimension_numbers<[1], [0], [0], [1], [0, 0, 1, 1], [], []>} : vector<8x128xbf16>, vector<128x128xbf16>, vector<8x128xf32> -> vector<8x128xf32>
    %c7 = arith.constant 7 : index
    %c0_24 = arith.constant 0 : index
    %64 = vector.load %arg1[%c7, %c0_24] : memref<10x128xf32, #tpu.memory_space<vmem>>, vector<1x128xf32>
    %65 = vector.broadcast %64 : vector<1x128xf32> to vector<8x128xf32>
    %66 = arith.addf %63, %65 : vector<8x128xf32>
    %cst_25 = arith.constant 0.000000e+00 : f32
    %67 = vector.broadcast %cst_25 : f32 to vector<8x128xf32>
    %68 = arith.maximumf %66, %67 : vector<8x128xf32>
    %c8 = arith.constant 8 : index
    %c0_26 = arith.constant 0 : index
    %69 = vector.load %arg1[%c8, %c0_26] : memref<10x128xf32, #tpu.memory_space<vmem>>, vector<1x128xf32>
    %c9 = arith.constant 9 : index
    %c0_27 = arith.constant 0 : index
    %70 = vector.load %arg1[%c9, %c0_27] : memref<10x128xf32, #tpu.memory_space<vmem>>, vector<1x128xf32>
    %71 = vector.broadcast %69 : vector<1x128xf32> to vector<8x128xf32>
    %72 = arith.mulf %68, %71 : vector<8x128xf32>
    %cst_28 = arith.constant dense<0.000000e+00> : vector<8xf32>
    %73 = vector.multi_reduction <add>, %72, %cst_28 [1] : vector<8x128xf32> to vector<8xf32>
    %74 = vector.shape_cast %73 : vector<8xf32> to vector<8x1xf32>
    %75 = vector.extract_strided_slice %70 {offsets = [0, 0], sizes = [1, 1], strides = [1, 1]} : vector<1x128xf32> to vector<1x1xf32>
    %76 = vector.broadcast %75 : vector<1x1xf32> to vector<8x1xf32>
    %77 = arith.addf %74, %76 : vector<8x1xf32>
    %c0_29 = arith.constant 0 : index
    %c0_30 = arith.constant 0 : index
    %78 = vector.load %arg3[%c0_29, %c0_30] : memref<8x1xf32, #tpu.memory_space<vmem>>, vector<8x1xf32>
    tpu.vector_store %arg3[%c0_29, %c0_30], %77 {strides = array<i32>} : memref<8x1xf32, #tpu.memory_space<vmem>>, vector<8x1xf32>,
    return
  }
}

</mosaic_0001>

<llo_original>
// kernel: tpu_custom_call.1
$region0: #{tpu_custom_call.1}
  #allocation0 [shape = 'u32[]', space=smem, size = 0x4, offset = 0x4, fixed_abs, tag = 'smem constant byte address 0x4 - core index']
  #allocation1 [shape = 'u32[144,128]{1,0:T(1,128)}', space=vmem, size = 0x12000, scoped, tag = 'internal scratch']
  %s0 = inlined_call_operand.vmem [shape: f32[8,4], index: 0, kind: input, shape index: {}]
  %s1 = inlined_call_operand.hbm [shape: f32[10,128], index: 1, kind: input, shape index: {}]
  %s2 = inlined_call_operand.hbm [shape: bf16[2,128,128], index: 2, kind: input, shape index: {}]
  %s3 = inlined_call_operand.vmem [shape: f32[8,1], index: 3, kind: output, shape index: {}]
  %s4 = sld [smem:[#allocation0]]
  $region30: #{tpu_custom_call.1} parent=0
    _
  %s6 = ssub.s32 1, %s4
  %s7 = scalar_select 0, %s6, %s4
  $region1: #{tpu_custom_call.1} parent=0
    #allocation2 [shape = 'u8[8192]{0}', space=vmem, size = 0x2000, scoped, tag = 'input window, operand 1, single buffered']
    #allocation3 [shape = 's32[1]{0}', space=sflag, size = 0x4, scoped, tag = 'scoped memory for tpu_custom_call.1']
    #allocation4 [shape = 'u8[65536]{0}', space=vmem, size = 0x10000, scoped, tag = 'input window, operand 2, single buffered']
    #allocation5 [shape = 's32[1]{0}', space=sflag, size = 0x4, scoped, tag = 'scoped memory for tpu_custom_call.1']
    %8 = vsyncpa [#allocation3], 0
    %9 = vsyncpa [#allocation5], 0
    // Predicated region
    $region2: #{tpu_custom_call.1} parent=1 // pred_check
      _
    $region3: #{tpu_custom_call.1} parent=1 // pred_check_branch
      %11 = sbr.rel (0) target = $region5
    $region4: #{tpu_custom_call.1} parent=1 // pred_region
      _
    $region5: #{tpu_custom_call.1} parent=1 // pred_fallthru
      _
    // Predicated region
    $region6: #{tpu_custom_call.1} parent=1 // pred_check
      _
    $region7: #{tpu_custom_call.1} parent=1 // pred_check_branch
      %13 = sbr.rel (0) target = $region9
    $region8: #{tpu_custom_call.1} parent=1 // pred_region
      %s15 = ssub.s32 256, 256
      %16 = vsyncadd [#allocation3], %s15
      %s17 = sshll.u32 [#allocation2], 4
      %s18 = int_to_ptr.vmem [resolvable:$true] %s17
      %23 = dma.hbm_to_vmem [thread:$0]  %s1, 256, %s18, [#allocation3], 128, 128, 8
    $region9: #{tpu_custom_call.1} parent=1 // pred_fallthru
      _
    // Predicated region
    $region10: #{tpu_custom_call.1} parent=1 // pred_check
      _
    $region11: #{tpu_custom_call.1} parent=1 // pred_check_branch
      %25 = sbr.rel (0) target = $region13
    $region12: #{tpu_custom_call.1} parent=1 // pred_region
      %s27 = ssub.s32 2048, 2048
      %28 = vsyncadd [#allocation5], %s27
      %s29 = sshll.u32 [#allocation4], 4
      %s30 = int_to_ptr.vmem [resolvable:$true] %s29
      %35 = dma.hbm_to_vmem [thread:$0]  %s2, 2048, %s30, [#allocation5], 64, 64, 4
    $region13: #{tpu_custom_call.1} parent=1 // pred_fallthru
      _
    // Predicated region
    $region14: #{tpu_custom_call.1} parent=1 // pred_check
      _
    $region15: #{tpu_custom_call.1} parent=1 // pred_check_branch
      %37 = sbr.rel (0) target = $region17
    $region16: #{tpu_custom_call.1} parent=1 // pred_region
      %38 = dma.done [#allocation3], 256
    $region17: #{tpu_custom_call.1} parent=1 // pred_fallthru
      _
    // Predicated region
    $region18: #{tpu_custom_call.1} parent=1 // pred_check
      _
    $region19: #{tpu_custom_call.1} parent=1 // pred_check_branch
      %40 = sbr.rel (0) target = $region21
    $region20: #{tpu_custom_call.1} parent=1 // pred_region
      %41 = dma.done [#allocation5], 2048
    $region21: #{tpu_custom_call.1} parent=1 // pred_fallthru
      _
    %v43 = vld [vmem:[%s0] sm:$0xff]
    %v44 = vld [vmem:[#allocation2] sm:$0x1]
    %46 = vset.pattern.permute.xlu0 0
    %47 = vperm.xlu0 %46, %v43
    %v48 = vpop.permute.xlu0 %47
    %v50 = vlaneseq
    %v51 = vshrl.u32 %v50, 7
    %v52 = vsub.s32 0, %v51
    %v53 = vrot.slane %v44, %v52
    %v54 = vmul.f32 %v48, %v53
    %v55 = vld [vmem:[#allocation2 + $0x1] sm:$0x1]
    %56 = vset.pattern.permute.xlu0 1
    %57 = vperm.xlu0 %56, %v43
    %v58 = vpop.permute.xlu0 %57
    %v60 = vlaneseq
    %v61 = vshrl.u32 %v60, 7
    %v62 = vsub.s32 0, %v61
    %v63 = vrot.slane %v55, %v62
    %v64 = vmul.f32 %v58, %v63
    %v65 = vadd.f32 %v54, %v64
    %v66 = vld [vmem:[#allocation2 + $0x2] sm:$0x1]
    %67 = vset.pattern.permute.xlu0 2
    %68 = vperm.xlu0 %67, %v43
    %v69 = vpop.permute.xlu0 %68
    %v71 = vlaneseq
    %v72 = vshrl.u32 %v71, 7
    %v73 = vsub.s32 0, %v72
    %v74 = vrot.slane %v66, %v73
    %v75 = vmul.f32 %v69, %v74
    %v76 = vadd.f32 %v65, %v75
    %v77 = vld [vmem:[#allocation2 + $0x3] sm:$0x1]
    %78 = vset.pattern.permute.xlu0 3
    %79 = vperm.xlu0 %78, %v43
    %v80 = vpop.permute.xlu0 %79
    %v82 = vlaneseq
    %v83 = vshrl.u32 %v82, 7
    %v84 = vsub.s32 0, %v83
    %v85 = vrot.slane %v77, %v84
    %v86 = vmul.f32 %v80, %v85
    %v87 = vadd.f32 %v76, %v86
    %v88 = vrot.slane %v87, 4
    %v89 = vadd.f32 %v87, %v88
    %v90 = vrot.slane %v89, 2
    %v91 = vadd.f32 %v89, %v90
    %v92 = vrot.slane %v91, 1
    %v93 = vadd.f32 %v91, %v92
    %v94 = vrcp.pop 8.0
    %v95 = vmul.f32 %v93, %v94
    %v96 = vmul.f32 %v87, %v87
    %v97 = vrot.slane %v96, 4
    %v98 = vadd.f32 %v96, %v97
    %v99 = vrot.slane %v98, 2
    %v100 = vadd.f32 %v98, %v99
    %v101 = vrot.slane %v100, 1
    %v102 = vadd.f32 %v100, %v101
    %v103 = vmul.f32 %v102, %v94
    %v104 = vmul.f32 %v95, %v95
    %v105 = vsub.f32 %v103, %v104
    %v106 = vmax.f32 %v105, 0.0
    %v107 = vld [vmem:[#allocation2 + $0x4] sm:$0x1]
    %v108 = vadd.f32 %v106, 1e-05
    %v109 = vrsqrt.pop %v108
    %v110 = vmul.f32 %v107, %v109
    %v111 = vld [vmem:[#allocation2 + $0x5] sm:$0x1]
    %v112 = vmul.f32 %v95, %v110
    %v113 = vsub.f32 %v111, %v112
    %v114 = vlaneseq
    %v115 = vshrl.u32 %v114, 7
    %v116 = vsub.s32 0, %v115
    %v117 = vrot.slane %v110, %v116
    %v118 = vmul.f32 %v87, %v117
    %v119 = vlaneseq
    %v120 = vshrl.u32 %v119, 7
    %v121 = vsub.s32 0, %v120
    %v122 = vrot.slane %v113, %v121
    %v123 = vadd.f32 %v118, %v122
    %v124 = vmax.f32 %v123, 0.0
    %v125 = vpack.c.bf16 %v124, %v124
    %v126 = vld [vmem:[#allocation4] sm:$0xf]
    %v127 = vld [vmem:[#allocation4 + $0x4] sm:$0xf]
    %v128 = vld [vmem:[#allocation4 + $0x8] sm:$0xf]
    %v129 = vld [vmem:[#allocation4 + $0xc] sm:$0xf]
    %v130 = vld [vmem:[#allocation4 + $0x10] sm:$0xf]
    %v131 = vld [vmem:[#allocation4 + $0x14] sm:$0xf]
    %v132 = vld [vmem:[#allocation4 + $0x18] sm:$0xf]
    %v133 = vld [vmem:[#allocation4 + $0x1c] sm:$0xf]
    %v134 = vld [vmem:[#allocation4 + $0x20] sm:$0xf]
    %v135 = vld [vmem:[#allocation4 + $0x24] sm:$0xf]
    %v136 = vld [vmem:[#allocation4 + $0x28] sm:$0xf]
    %v137 = vld [vmem:[#allocation4 + $0x2c] sm:$0xf]
    %v138 = vld [vmem:[#allocation4 + $0x30] sm:$0xf]
    %v139 = vld [vmem:[#allocation4 + $0x34] sm:$0xf]
    %v140 = vld [vmem:[#allocation4 + $0x38] sm:$0xf]
    %v141 = vld [vmem:[#allocation4 + $0x3c] sm:$0xf]
    %v142 = vld [vmem:[#allocation2 + $0x6] sm:$0x1]
    %v143 = vlaneseq
    %v144 = vshrl.u32 %v143, 7
    %v145 = vsub.s32 0, %v144
    %v146 = vrot.slane %v142, %v145
    %v163 = vunpack.c.l.b16 %v126
    %v164 = vunpack.c.l.b16 %v127
    %v165 = vunpack.c.l.b16 %v128
    %v166 = vunpack.c.l.b16 %v129
    %v167 = vunpack.c.l.b16 %v130
    %v168 = vunpack.c.l.b16 %v131
    %v169 = vunpack.c.l.b16 %v132
    %v170 = vunpack.c.l.b16 %v133
    %v171 = vunpack.c.l.b16 %v134
    %v172 = vunpack.c.l.b16 %v135
    %v173 = vunpack.c.l.b16 %v136
    %v174 = vunpack.c.l.b16 %v137
    %v175 = vunpack.c.l.b16 %v138
    %v176 = vunpack.c.l.b16 %v139
    %v177 = vunpack.c.l.b16 %v140
    %v178 = vunpack.c.l.b16 %v141
    %v179 = vpack.c.b16 %v164, %v163
    %v180 = vpack.c.b16 %v166, %v165
    %v181 = vpack.c.b16 %v168, %v167
    %v182 = vpack.c.b16 %v170, %v169
    %v183 = vpack.c.b16 %v172, %v171
    %v184 = vpack.c.b16 %v174, %v173
    %v185 = vpack.c.b16 %v176, %v175
    %v186 = vpack.c.b16 %v178, %v177
    %195 = vmatprep.subr.bf16.mxu0 0
    %196 = vmatpush1.bf16.msra.mxu0 %v186
    %197 = vmatprep.subr.bf16.mxu0 0
    %198 = vmatpush1.bf16.msra.mxu0 %v185
    %199 = vmatprep.subr.bf16.mxu0 0
    %200 = vmatpush1.bf16.msra.mxu0 %v184
    %201 = vmatprep.subr.bf16.mxu0 0
    %202 = vmatpush1.bf16.msra.mxu0 %v183
    %203 = vmatprep.subr.bf16.mxu0 0
    %204 = vmatpush1.bf16.msra.mxu0 %v182
    %205 = vmatprep.subr.bf16.mxu0 0
    %206 = vmatpush1.bf16.msra.mxu0 %v181
    %207 = vmatprep.subr.bf16.mxu0 0
    %208 = vmatpush1.bf16.msra.mxu0 %v180
    %209 = vmatprep.subr.bf16.mxu0 0
    %210 = vmatpush1.bf16.msra.mxu0 %v179
    %211 = vmatprep.subr.bf16.mxu0 0
    %212 = vmatpush2.bf16.msra.mxu0 0
    %213 = vmatprep.subr.bf16.mxu0 0
    %214 = vmatpush2.bf16.msra.mxu0 0
    %215 = vmatprep.subr.bf16.mxu0 0
    %216 = vmatpush2.bf16.msra.mxu0 0
    %217 = vmatprep.subr.bf16.mxu0 0
    %218 = vmatpush2.bf16.msra.mxu0 0
    %219 = vmatprep.subr.bf16.mxu0 0
    %220 = vmatpush2.bf16.msra.mxu0 0
    %221 = vmatprep.subr.bf16.mxu0 0
    %222 = vmatpush2.bf16.msra.mxu0 0
    %223 = vmatprep.subr.bf16.mxu0 0
    %224 = vmatpush2.bf16.msra.mxu0 0
    %225 = vmatprep.subr.bf16.mxu0 0
    %226 = vmatpush2.bf16.msra.mxu0 0
    %227 = vmatprep.mubr.bf16.mxu0 0
    %228 = vmatmul.mubr.bf16.gmra.mxu0 %v125
    %v229 = vpop.f32.mrf.mxu0
    %v230 = vadd.f32 %v146, %v229
    %v231 = vpop.f32.mrf.mxu0
    %v232 = vpop.f32.mrf.mxu0
    %v233 = vpop.f32.mrf.mxu0
    %234 = vdwg.mxu0
    %v235 = vmax.f32 %v230, 0.0
    %v236 = vpack.c.bf16 %v235, %v235
    %s237 = scalar_lea.vmem [#allocation4], 64
    %v238 = vld [vmem:[%s237] sm:$0xf]
    %v239 = vld [vmem:[%s237 + $0x4] sm:$0xf]
    %v240 = vld [vmem:[%s237 + $0x8] sm:$0xf]
    %v241 = vld [vmem:[%s237 + $0xc] sm:$0xf]
    %v242 = vld [vmem:[%s237 + $0x10] sm:$0xf]
    %v243 = vld [vmem:[%s237 + $0x14] sm:$0xf]
    %v244 = vld [vmem:[%s237 + $0x18] sm:$0xf]
    %v245 = vld [vmem:[%s237 + $0x1c] sm:$0xf]
    %v246 = vld [vmem:[%s237 + $0x20] sm:$0xf]
    %v247 = vld [vmem:[%s237 + $0x24] sm:$0xf]
    %v248 = vld [vmem:[%s237 + $0x28] sm:$0xf]
    %v249 = vld [vmem:[%s237 + $0x2c] sm:$0xf]
    %v250 = vld [vmem:[%s237 + $0x30] sm:$0xf]
    %v251 = vld [vmem:[%s237 + $0x34] sm:$0xf]
    %v252 = vld [vmem:[%s237 + $0x38] sm:$0xf]
    %v253 = vld [vmem:[%s237 + $0x3c] sm:$0xf]
    %v254 = vld [vmem:[#allocation2 + $0x7] sm:$0x1]
    %v255 = vlaneseq
    %v256 = vshrl.u32 %v255, 7
    %v257 = vsub.s32 0, %v256
    %v258 = vrot.slane %v254, %v257
    %v275 = vunpack.c.l.b16 %v238
    %v276 = vunpack.c.l.b16 %v239
    %v277 = vunpack.c.l.b16 %v240
    %v278 = vunpack.c.l.b16 %v241
    %v279 = vunpack.c.l.b16 %v242
    %v280 = vunpack.c.l.b16 %v243
    %v281 = vunpack.c.l.b16 %v244
    %v282 = vunpack.c.l.b16 %v245
    %v283 = vunpack.c.l.b16 %v246
    %v284 = vunpack.c.l.b16 %v247
    %v285 = vunpack.c.l.b16 %v248
    %v286 = vunpack.c.l.b16 %v249
    %v287 = vunpack.c.l.b16 %v250
    %v288 = vunpack.c.l.b16 %v251
    %v289 = vunpack.c.l.b16 %v252
    %v290 = vunpack.c.l.b16 %v253
    %v291 = vpack.c.b16 %v276, %v275
    %v292 = vpack.c.b16 %v278, %v277
    %v293 = vpack.c.b16 %v280, %v279
    %v294 = vpack.c.b16 %v282, %v281
    %v295 = vpack.c.b16 %v284, %v283
    %v296 = vpack.c.b16 %v286, %v285
    %v297 = vpack.c.b16 %v288, %v287
    %v298 = vpack.c.b16 %v290, %v289
    %307 = vmatprep.subr.bf16.mxu0 0
    %308 = vmatpush1.bf16.msra.mxu0 %v298
    %309 = vmatprep.subr.bf16.mxu0 0
    %310 = vmatpush1.bf16.msra.mxu0 %v297
    %311 = vmatprep.subr.bf16.mxu0 0
    %312 = vmatpush1.bf16.msra.mxu0 %v296
    %313 = vmatprep.subr.bf16.mxu0 0
    %314 = vmatpush1.bf16.msra.mxu0 %v295
    %315 = vmatprep.subr.bf16.mxu0 0
    %316 = vmatpush1.bf16.msra.mxu0 %v294
    %317 = vmatprep.subr.bf16.mxu0 0
    %318 = vmatpush1.bf16.msra.mxu0 %v293
    %319 = vmatprep.subr.bf16.mxu0 0
    %320 = vmatpush1.bf16.msra.mxu0 %v292
    %321 = vmatprep.subr.bf16.mxu0 0
    %322 = vmatpush1.bf16.msra.mxu0 %v291
    %323 = vmatprep.subr.bf16.mxu0 0
    %324 = vmatpush2.bf16.msra.mxu0 0
    %325 = vmatprep.subr.bf16.mxu0 0
    %326 = vmatpush2.bf16.msra.mxu0 0
    %327 = vmatprep.subr.bf16.mxu0 0
    %328 = vmatpush2.bf16.msra.mxu0 0
    %329 = vmatprep.subr.bf16.mxu0 0
    %330 = vmatpush2.bf16.msra.mxu0 0
    %331 = vmatprep.subr.bf16.mxu0 0
    %332 = vmatpush2.bf16.msra.mxu0 0
    %333 = vmatprep.subr.bf16.mxu0 0
    %334 = vmatpush2.bf16.msra.mxu0 0
    %335 = vmatprep.subr.bf16.mxu0 0
    %336 = vmatpush2.bf16.msra.mxu0 0
    %337 = vmatprep.subr.bf16.mxu0 0
    %338 = vmatpush2.bf16.msra.mxu0 0
    %339 = vmatprep.mubr.bf16.mxu0 0
    %340 = vmatmul.mubr.bf16.gmra.mxu0 %v236
    %v341 = vpop.f32.mrf.mxu0
    %v342 = vadd.f32 %v258, %v341
    %v343 = vpop.f32.mrf.mxu0
    %v344 = vpop.f32.mrf.mxu0
    %v345 = vpop.f32.mrf.mxu0
    %346 = vdwg.mxu0
    %v347 = vmax.f32 %v342, 0.0
    %v348 = vld [vmem:[#allocation2 + $0x8] sm:$0x1]
    %v349 = vld [vmem:[#allocation2 + $0x9] sm:$0x1]
    %v350 = vlaneseq
    %v351 = vshrl.u32 %v350, 7
    %v352 = vsub.s32 0, %v351
    %v353 = vrot.slane %v348, %v352
    %v354 = vmul.f32 %v347, %v353
    %355 = vadd.xlane.f32.xlu0 %v354
    %v356 = vpop.xlane.xlu0 %355
    %v357 = vlaneseq
    %v358 = vshrl.u32 %v357, 7
    %v359 = vsub.s32 0, %v358
    %v360 = vrot.slane %v349, %v359
    %v361 = vadd.f32 %v356, %v360
    %vm362 = vcmask 7168
    %363 = vst.msk [vmem:[%s3] sm:$0xff] %vm362, %v361
    // Predicated region
    $region22: #{tpu_custom_call.1} parent=1 // pred_check
      _
    $region23: #{tpu_custom_call.1} parent=1 // pred_check_branch
      %365 = sbr.rel (0) target = $region25
    $region24: #{tpu_custom_call.1} parent=1 // pred_region
      _
    $region25: #{tpu_custom_call.1} parent=1 // pred_fallthru
      _
    // Predicated region
    $region26: #{tpu_custom_call.1} parent=1 // pred_check
      _
    $region27: #{tpu_custom_call.1} parent=1 // pred_check_branch
      %367 = sbr.rel (0) target = $region29
    $region28: #{tpu_custom_call.1} parent=1 // pred_region
      _
    $region29: #{tpu_custom_call.1} parent=1 // pred_fallthru
      _
    %368 = vsyncpa [#allocation3], 1
    %369 = vsyncpa [#allocation5], 1

</llo_original>
